<compile_context>
chip_gen: v6e
topology: v6e:2x2x1
jax: 0.10.0
libtpu: 0.0.40
codegen_flags: <defaults>
</compile_context>

<pallas_src>
import jax
import jax.numpy as jnp
from jax.experimental import pallas as pl
from jax.experimental.pallas import tpu as pltpu


def _conv1d_k3_kernel(x_ref, halo_ref, w_ref, b_ref, o_ref):
    """One (batch, L-tile) grid step.

    x_ref:    (1, Cin, TL)     centre tile of x (NCL, L on lanes)
    halo_ref: (1, 1, Cin, 2)   [..., 0] = column x[:, l0-1], [..., 1] = x[:, l0+TL]
                               (zero-filled at the sequence boundaries)
    w_ref:    (Cout, 3*Cin)    fused taps, column k*Cin + c == weight[o, c, k]
    b_ref:    (Cout, 1)        f32 bias
    o_ref:    (1, Cout, TL)
    """
    tl = x_ref.shape[2]
    xc = x_ref[0]                                   # (Cin, TL)
    halo = halo_ref[0, 0]                           # (Cin, 2)
    lh = halo[:, 0:1]                               # (Cin, 1) left-neighbour column
    rh = halo[:, 1:2]                               # (Cin, 1) right-neighbour column

    # Shifted views of the tile (stride-1 conv taps), halo columns at the edges.
    xl = jnp.concatenate([lh, xc[:, : tl - 1]], axis=1)   # x[:, l0-1 : l0+TL-1]
    xr = jnp.concatenate([xc[:, 1:], rh], axis=1)         # x[:, l0+1 : l0+TL+1]

    # Fuse the 3 taps into a single MXU matmul with K = 3*Cin.
    stacked = jnp.concatenate([xl, xc, xr], axis=0)        # (3*Cin, TL)
    stacked = stacked.astype(w_ref.dtype)                  # e.g. bf16 MXU path

    acc = jnp.dot(w_ref[...], stacked, preferred_element_type=jnp.float32)
    acc = acc + b_ref[...]                                 # f32 epilogue
    o_ref[0] = acc.astype(o_ref.dtype)


def _pick_l_tile(L, C, itemsize, max_tl=None):
    """Pick (tile, padded_L).  The tile is a multiple of 128 (or == L for a
    single tile) and keeps a (C, TL) block around ~2 MiB so double-buffered
    in/out blocks plus the resident weights stay well inside the scoped-VMEM
    defaults on all TPU generations.  L is padded up to a tile multiple."""
    target = (2 * 1024 * 1024) // max(1, C * itemsize)
    if max_tl is not None:
        target = min(target, max_tl)
    target = max(128, target)
    if L <= target:
        return L, L                      # single tile, no padding
    tl = (target // 128) * 128
    padded = ((L + tl - 1) // tl) * tl
    return tl, padded


def conv1d_k3_pallas(x_ncl, weight, bias, *, compute_dtype=None, max_tl=None):
    """Conv1d(C, C, kernel_size=3, stride=1, padding=1) in NCL layout.

    x_ncl:  (B, C, L)       weight: (Cout, Cin, 3)       bias: (Cout,)
    compute_dtype: optional MXU input dtype (e.g. jnp.bfloat16); accumulation
                   and the bias epilogue stay f32, output keeps x's dtype.
    returns (B, Cout, L)
    """
    B, C, L = x_ncl.shape
    Cout, Cin, K = weight.shape
    assert K == 3 and Cin == C

    w_dtype = compute_dtype if compute_dtype is not None else x_ncl.dtype
    # W_fused[o, k*Cin + c] = weight[o, c, k]  (matches the [xl; xc; xr] stack).
    w_fused = jnp.transpose(weight, (0, 2, 1)).reshape(Cout, 3 * Cin).astype(w_dtype)
    b_col = bias.reshape(Cout, 1).astype(jnp.float32)

    itemsize = jnp.dtype(x_ncl.dtype).itemsize
    tl, Lp = _pick_l_tile(L, C, itemsize, max_tl)
    num_tiles = Lp // tl

    # Zero-pad L up to a tile multiple (zeros == the conv's own zero padding,
    # and the extra output columns are sliced off below).
    x_pad = x_ncl if Lp == L else jnp.pad(x_ncl, ((0, 0), (0, 0), (0, Lp - L)))

    # Tiny halo side-channel: one column per side per tile (zeros at the ends).
    zero_col = jnp.zeros((B, C, 1), x_ncl.dtype)
    if num_tiles == 1:
        lh_cols = zero_col
        rh_cols = zero_col
    else:
        lh_cols = jnp.concatenate([zero_col, x_pad[:, :, tl - 1:Lp - 1:tl]], axis=2)
        rh_cols = jnp.concatenate([x_pad[:, :, tl:Lp:tl], zero_col], axis=2)
    halo = jnp.stack([jnp.transpose(lh_cols, (0, 2, 1)),
                      jnp.transpose(rh_cols, (0, 2, 1))], axis=-1)  # (B, nt, C, 2)

    flops = 2 * B * Cout * 3 * Cin * Lp
    bytes_accessed = int(
        B * C * Lp * itemsize
        + B * Cout * Lp * itemsize
        + w_fused.size * jnp.dtype(w_dtype).itemsize
        + halo.size * itemsize
        + b_col.size * 4)

    out = pl.pallas_call(
        _conv1d_k3_kernel,
        out_shape=jax.ShapeDtypeStruct((B, Cout, Lp), x_ncl.dtype),
        grid=(B, num_tiles),
        in_specs=[
            pl.BlockSpec((1, C, tl), lambda b, i: (b, 0, i)),
            pl.BlockSpec((1, 1, C, 2), lambda b, i: (b, i, 0, 0)),
            # Constant index maps: weights/bias stay VMEM-resident across steps.
            pl.BlockSpec((Cout, 3 * Cin), lambda b, i: (0, 0)),
            pl.BlockSpec((Cout, 1), lambda b, i: (0, 0)),
        ],
        out_specs=pl.BlockSpec((1, Cout, tl), lambda b, i: (b, 0, i)),
        compiler_params=pltpu.CompilerParams(
            dimension_semantics=("parallel", "parallel"),
            vmem_limit_bytes=32 * 1024 * 1024),
        cost_estimate=pl.CostEstimate(
            flops=flops, transcendentals=0, bytes_accessed=bytes_accessed),
    )(x_pad, halo, w_fused, b_col)

    if Lp != L:
        out = out[:, :, :L]
    return out


class UpsamplePallas:
    """Mirror of the PyTorch Upsample module (Conv1d k=3 s=1 p=1 or identity)."""

    def __init__(self, channels, use_conv, key):
        self.use_conv = use_conv
        if use_conv:
            kw, kb = jax.random.split(key)
            bound = 1.0 / jnp.sqrt(channels * 3.0)
            self.weight = jax.random.uniform(
                kw, (channels, channels, 3), jnp.float32, -bound, bound)
            self.bias = jax.random.uniform(
                kb, (channels,), jnp.float32, -bound, bound)

    def __call__(self, x):
        if self.use_conv:
            x = conv1d_k3_pallas(x, self.weight, self.bias)
        return x


def _conv1d_ref(x_ncl, weight, bias):
    """Pure-JAX reference (full-precision) for correctness checking."""
    B, C, L = x_ncl.shape
    x_blc = jnp.transpose(x_ncl, (0, 2, 1))
    x_pad = jnp.pad(x_blc, ((0, 0), (1, 1), (0, 0)))
    w_kio = jnp.transpose(weight, (2, 1, 0))
    out = jnp.zeros((B, L, weight.shape[0]), jnp.float32)
    for k in range(3):
        out = out + jnp.einsum('blc,co->blo', x_pad[:, k:k + L, :], w_kio[k],
                               precision=jax.lax.Precision.HIGHEST)
    out = out + bias[None, None, :]
    return jnp.transpose(out, (0, 2, 1)).astype(x_ncl.dtype)


if __name__ == "__main__":
    key = jax.random.PRNGKey(0)
    k_x, k_mod, k_x2, k_w2, k_b2, k_x3, k_w3, k_b3 = jax.random.split(key, 8)

    # --- small test at module-implied shapes: (batch, channels, length) ---
    B, C, L = 2, 4, 16
    x = jax.random.normal(k_x, (B, C, L), jnp.float32)
    mod = UpsamplePallas(channels=C, use_conv=True, key=k_mod)
    out = jax.block_until_ready(mod(x))
    ref = _conv1d_ref(x, mod.weight, mod.bias)
    assert out.shape == (B, C, L)
    assert jnp.allclose(out, ref, atol=1e-5, rtol=1e-5)

    # Identity path (use_conv=False).
    mod_id = UpsamplePallas(channels=C, use_conv=False, key=k_mod)
    out_id = jax.block_until_ready(mod_id(x))
    assert out_id.shape == x.shape and jnp.allclose(out_id, x)

    # --- multi-tile path: exercises L-tiling + halo handling (4 tiles) ---
    B2, C2, L2 = 2, 128, 512
    x2 = jax.random.normal(k_x2, (B2, C2, L2), jnp.float32)
    bound = 1.0 / (3.0 * C2) ** 0.5
    w2 = jax.random.uniform(k_w2, (C2, C2, 3), jnp.float32, -bound, bound)
    b2 = jax.random.uniform(k_b2, (C2,), jnp.float32, -bound, bound)
    out2 = jax.block_until_ready(conv1d_k3_pallas(x2, w2, b2, max_tl=128))
    ref2 = _conv1d_ref(x2, w2, b2)
    assert jnp.allclose(out2, ref2, atol=1e-4, rtol=1e-4)

    # --- bf16 MXU path (weights + activation tile in bf16, f32 accumulate) ---
    out3 = jax.block_until_ready(
        conv1d_k3_pallas(x2, w2, b2, compute_dtype=jnp.bfloat16, max_tl=128))
    assert jnp.allclose(out3, ref2, atol=1e-1, rtol=5e-2)

    # --- ragged L (not a multiple of 128): padded multi-tile path ---
    B3, C3, L3 = 2, 64, 300
    x3 = jax.random.normal(k_x3, (B3, C3, L3), jnp.float32)
    bound3 = 1.0 / (3.0 * C3) ** 0.5
    w3 = jax.random.uniform(k_w3, (C3, C3, 3), jnp.float32, -bound3, bound3)
    b3 = jax.random.uniform(k_b3, (C3,), jnp.float32, -bound3, bound3)
    out4 = jax.block_until_ready(conv1d_k3_pallas(x3, w3, b3, max_tl=128))
    ref4 = _conv1d_ref(x3, w3, b3)
    assert out4.shape == (B3, C3, L3)
    assert jnp.allclose(out4, ref4, atol=1e-4, rtol=1e-4)

    print("KERNEL_OK")
</pallas_src>

<mosaic_0001>
module attributes {stable_mosaic.version = 11 : i64} {
  func.func @_conv1d_k3_kernel(%arg0: i32, %arg1: i32, %arg2: memref<1x4x16xf32, #tpu.memory_space<vmem>>, %arg3: memref<1x1x4x2xf32, #tpu.memory_space<vmem>>, %arg4: memref<4x12xf32, #tpu.memory_space<vmem>>, %arg5: memref<4x1xf32, #tpu.memory_space<vmem>>, %arg6: memref<1x4x16xf32, #tpu.memory_space<vmem>>) attributes {dimension_semantics = [#tpu.dimension_semantics<parallel>, #tpu.dimension_semantics<parallel>], iteration_bounds = array<i64: 2, 1>, scalar_prefetch = 0 : i64, scratch_operands = 0 : i64, tpu.core_type = #tpu.core_type<tc>, window_params = [{transform_indices = @transform_0, window_bounds = array<i64: 1, 4, 16>}, {transform_indices = @transform_1, window_bounds = array<i64: 1, 1, 4, 2>}, {pipeline_mode = #tpu.pipeline_mode<synchronous>, transform_indices = @transform_2, window_bounds = array<i64: 4, 12>}, {pipeline_mode = #tpu.pipeline_mode<synchronous>, transform_indices = @transform_3, window_bounds = array<i64: 4, 1>}, {transform_indices = @transform_4, window_bounds = array<i64: 1, 4, 16>}]} {
    %c0 = arith.constant 0 : index
    %c0_0 = arith.constant 0 : index
    %c0_1 = arith.constant 0 : index
    %0 = vector.load %arg2[%c0, %c0_0, %c0_1] : memref<1x4x16xf32, #tpu.memory_space<vmem>>, vector<1x4x16xf32>
    %1 = vector.shape_cast %0 : vector<1x4x16xf32> to vector<4x16xf32>
    %c0_2 = arith.constant 0 : index
    %c0_3 = arith.constant 0 : index
    %c0_4 = arith.constant 0 : index
    %c0_5 = arith.constant 0 : index
    %2 = vector.load %arg3[%c0_2, %c0_3, %c0_4, %c0_5] : memref<1x1x4x2xf32, #tpu.memory_space<vmem>>, vector<1x1x4x2xf32>
    %3 = vector.shape_cast %2 : vector<1x1x4x2xf32> to vector<4x2xf32>
    %4 = vector.extract_strided_slice %3 {offsets = [0, 0], sizes = [4, 1], strides = [1, 1]} : vector<4x2xf32> to vector<4x1xf32>
    %5 = vector.extract_strided_slice %3 {offsets = [0, 1], sizes = [4, 1], strides = [1, 1]} : vector<4x2xf32> to vector<4x1xf32>
    %6 = vector.extract_strided_slice %1 {offsets = [0, 0], sizes = [4, 15], strides = [1, 1]} : vector<4x16xf32> to vector<4x15xf32>
    %7 = tpu.concatenate %4, %6 in 1 : vector<4x1xf32>, vector<4x15xf32> -> vector<4x16xf32>
    %8 = vector.extract_strided_slice %1 {offsets = [0, 1], sizes = [4, 15], strides = [1, 1]} : vector<4x16xf32> to vector<4x15xf32>
    %9 = tpu.concatenate %8, %5 in 1 : vector<4x15xf32>, vector<4x1xf32> -> vector<4x16xf32>
    %10 = tpu.concatenate %7, %1, %9 in 0 : vector<4x16xf32>, vector<4x16xf32>, vector<4x16xf32> -> vector<12x16xf32>
    %c0_6 = arith.constant 0 : index
    %c0_7 = arith.constant 0 : index
    %11 = vector.load %arg4[%c0_6, %c0_7] : memref<4x12xf32, #tpu.memory_space<vmem>>, vector<4x12xf32>
    %cst = arith.constant dense<0.000000e+00> : vector<4x16xf32>
    %12 = tpu.matmul %11, %10, %cst {dimension_numbers = #tpu.dot_dimension_numbers<[1], [0], [0], [1], [0, 0, 1, 1], [], []>} : vector<4x12xf32>, vector<12x16xf32>, vector<4x16xf32> -> vector<4x16xf32>
    %c0_8 = arith.constant 0 : index
    %c0_9 = arith.constant 0 : index
    %13 = vector.load %arg5[%c0_8, %c0_9] : memref<4x1xf32, #tpu.memory_space<vmem>>, vector<4x1xf32>
    %14 = vector.broadcast %13 : vector<4x1xf32> to vector<4x16xf32>
    %15 = arith.addf %12, %14 : vector<4x16xf32>
    %c0_10 = arith.constant 0 : index
    %c0_11 = arith.constant 0 : index
    %c0_12 = arith.constant 0 : index
    %16 = vector.load %arg6[%c0_10, %c0_11, %c0_12] : memref<1x4x16xf32, #tpu.memory_space<vmem>>, vector<1x4x16xf32>
    %17 = vector.shape_cast %16 : vector<1x4x16xf32> to vector<4x16xf32>
    %18 = vector.shape_cast %15 : vector<4x16xf32> to vector<1x4x16xf32>
    tpu.vector_store %arg6[%c0_10, %c0_11, %c0_12], %18 {strides = array<i32>} : memref<1x4x16xf32, #tpu.memory_space<vmem>>, vector<1x4x16xf32>,
    return
  }
  func.func @transform_0(%arg0: i32, %arg1: i32) -> (i32, i32, i32) {
    %c0_i32 = arith.constant 0 : i32
    %c0_i32_0 = arith.constant 0 : i32
    return %arg0, %c0_i32, %arg1 : i32, i32, i32
  }
  func.func @transform_1(%arg0: i32, %arg1: i32) -> (i32, i32, i32, i32) {
    %c0_i32 = arith.constant 0 : i32
    %c0_i32_0 = arith.constant 0 : i32
    %c0_i32_1 = arith.constant 0 : i32
    return %arg0, %arg1, %c0_i32, %c0_i32_0 : i32, i32, i32, i32
  }
  func.func @transform_2(%arg0: i32, %arg1: i32) -> (i32, i32) {
    %c0_i32 = arith.constant 0 : i32
    %c0_i32_0 = arith.constant 0 : i32
    %c0_i32_1 = arith.constant 0 : i32
    return %c0_i32, %c0_i32_0 : i32, i32
  }
  func.func @transform_3(%arg0: i32, %arg1: i32) -> (i32, i32) {
    %c0_i32 = arith.constant 0 : i32
    %c0_i32_0 = arith.constant 0 : i32
    %c0_i32_1 = arith.constant 0 : i32
    return %c0_i32, %c0_i32_0 : i32, i32
  }
  func.func @transform_4(%arg0: i32, %arg1: i32) -> (i32, i32, i32) {
    %c0_i32 = arith.constant 0 : i32
    %c0_i32_0 = arith.constant 0 : i32
    return %arg0, %c0_i32, %arg1 : i32, i32, i32
  }
}

</mosaic_0001>

<llo_original>
// kernel: tpu_custom_call.1
$region0: #{tpu_custom_call.1}
  #allocation0 [shape = 'u32[]', space=smem, size = 0x4, offset = 0x4, fixed_abs, tag = 'smem constant byte address 0x4 - core index']
  #allocation1 [shape = 'u32[144,128]{1,0:T(1,128)}', space=vmem, size = 0x12000, scoped, tag = 'internal scratch']
  %s0 = inlined_call_operand.vmem [shape: f32[2,4,16], index: 0, kind: input, shape index: {}]
  %s1 = inlined_call_operand.vmem [shape: f32[2,1,4,2], index: 1, kind: input, shape index: {}]
  %s2 = inlined_call_operand.vmem [shape: f32[4,12], index: 2, kind: input, shape index: {}]
  %s3 = inlined_call_operand.vmem [shape: f32[4,1], index: 3, kind: input, shape index: {}]
  %s4 = inlined_call_operand.hbm [shape: f32[2,4,16], index: 4, kind: output, shape index: {}]
  %s5 = sld [smem:[#allocation0]]
  $region49: #{tpu_custom_call.1} parent=0
    _
  %s7 = ssub.s32 1, %s5
  %s8 = scalar_select 0, %s7, %s5
  $region1: #{tpu_custom_call.1} parent=0
    #allocation2 [shape = 'u8[4096]{0}', space=vmem, size = 0x1000, scoped, tag = 'output window, operand 0']
    #allocation3 [shape = 's32[2]{0}', space=sflag, size = 0x8, scoped, tag = 'scoped memory for tpu_custom_call.1']
    %9 = vsyncpa [#allocation3], 0
    %s10 = scalar_lea.sflag [#allocation3], 1
    %11 = vsyncpa %s10, 0
    loop: start=0, step=1, limit=4
    $region2: #{tpu_custom_call.1} parent=1 // loop_pre_header
      _
    $region3: #{tpu_custom_call.1} parent=1 // loop_header
      %s13 = sphi 0, %s17
      %p14 = scmp.ge.s32.totalorder %s13, 4
      %s20 = sphi 0, %s32
      %s21 = sphi 0, %s28
      %s22 = sphi 0, %s20
      %s23 = sphi 0, %s21
      %s24 = sphi 0, %s22
      %s25 = sphi 0, %s23
      %s37 = sphi 0, %s39
      %s40 = sphi 0, %s37
      %s41 = sphi 0, %s40
      %s57 = sphi 0, %s41
      %s65 = sphi 0, %s67
      %s68 = sphi 0, %s65
      %s69 = sphi 0, %s68
      %s85 = sphi 0, %s69
      %s89 = sphi 0, %s89
      %s91 = sphi 0, %s89
      %s92 = sphi 0, %s91
      %s106 = sphi 0, %s92
      %s110 = sphi 0, %s110
      %s112 = sphi 0, %s110
      %s113 = sphi 0, %s112
      %s127 = sphi 0, %s113
      %s135 = sphi 0, %s137
      %s138 = sphi 0, %s135
      %s139 = sphi 0, %s138
      %s155 = sphi 0, %s139
    $region4: #{tpu_custom_call.1} parent=1 // loop_header_branch
      %16 = sbr.rel (%p14) target = $region8
    $region5: #{tpu_custom_call.1} parent=1 // loop_body
      %s18 = ssub.s32 %s13, 1
      %s19 = ssub.s32 %s13, 2
      %s26 = sadd.s32 1, %s21
      %p27 = scmp.ge.s32.totalorder %s26, 1
      %s28 = scalar_select %p27, 0, %s26
      %s29 = sadd.s32 1, %s20
      %s30 = scalar_select %p27, %s29, %s20
      %p31 = scmp.ge.s32.totalorder %s30, 2
      %s32 = scalar_select %p31, 0, %s30
      %s33 = ssub.s32 %s20, %s32
      %s34 = ssub.s32 %s21, %s28
      %s35 = sor.u32 %s33, %s34
      %p36 = scmp.eq.s32.totalorder %s35, 0
      %s38 = sadd.s32 %s37, 1
      %s39 = scalar_select %p36, %s37, %s38
      %p42 = pneg %p36
      %p43 = scmp.eq.s32.totalorder %s13, 1
      %p44 = por %p42, %p43
      %p45 = scmp.ne.s32.totalorder %s37, %s40
      %p46 = scmp.eq.s32.totalorder %s13, 0
      %p47 = por %p45, %p46
      %p48 = scmp.ne.s32.totalorder %s37, %s40
      %p49 = scmp.eq.s32.totalorder %s18, 1
      %p50 = por %p48, %p49
      %p51 = scmp.ne.s32.totalorder %s40, %s41
      %p52 = scmp.eq.s32.totalorder %s18, 0
      %p53 = por %p51, %p52
      %p54 = scmp.ne.s32.totalorder %s40, %s41
      %p55 = scmp.eq.s32.totalorder %s19, 1
      %p56 = por %p54, %p55
      %p58 = scmp.ne.s32.totalorder %s41, %s57
      %p59 = scmp.eq.s32.totalorder %s19, 0
      %p60 = por %p58, %p59
      %s61 = ssub.s32 %s20, %s32
      %s62 = ssub.s32 %s21, %s28
      %s63 = sor.u32 %s61, %s62
      %p64 = scmp.eq.s32.totalorder %s63, 0
      %s66 = sadd.s32 %s65, 1
      %s67 = scalar_select %p64, %s65, %s66
      %p70 = pneg %p64
      %p71 = scmp.eq.s32.totalorder %s13, 1
      %p72 = por %p70, %p71
      %p73 = scmp.ne.s32.totalorder %s65, %s68
      %p74 = scmp.eq.s32.totalorder %s13, 0
      %p75 = por %p73, %p74
      %p76 = scmp.ne.s32.totalorder %s65, %s68
      %p77 = scmp.eq.s32.totalorder %s18, 1
      %p78 = por %p76, %p77
      %p79 = scmp.ne.s32.totalorder %s68, %s69
      %p80 = scmp.eq.s32.totalorder %s18, 0
      %p81 = por %p79, %p80
      %p82 = scmp.ne.s32.totalorder %s68, %s69
      %p83 = scmp.eq.s32.totalorder %s19, 1
      %p84 = por %p82, %p83
      %p86 = scmp.ne.s32.totalorder %s69, %s85
      %p87 = scmp.eq.s32.totalorder %s19, 0
      %p88 = por %p86, %p87
      %s90 = sadd.s32 %s89, 1
      %p93 = scmp.eq.s32.totalorder %s13, 1
      %p94 = scmp.ne.s32.totalorder %s89, %s91
      %p95 = scmp.eq.s32.totalorder %s13, 0
      %p96 = por %p94, %p95
      %p97 = scmp.ne.s32.totalorder %s89, %s91
      %p98 = scmp.eq.s32.totalorder %s18, 1
      %p99 = por %p97, %p98
      %p100 = scmp.ne.s32.totalorder %s91, %s92
      %p101 = scmp.eq.s32.totalorder %s18, 0
      %p102 = por %p100, %p101
      %p103 = scmp.ne.s32.totalorder %s91, %s92
      %p104 = scmp.eq.s32.totalorder %s19, 1
      %p105 = por %p103, %p104
      %p107 = scmp.ne.s32.totalorder %s92, %s106
      %p108 = scmp.eq.s32.totalorder %s19, 0
      %p109 = por %p107, %p108
      %s111 = sadd.s32 %s110, 1
      %p114 = scmp.eq.s32.totalorder %s13, 1
      %p115 = scmp.ne.s32.totalorder %s110, %s112
      %p116 = scmp.eq.s32.totalorder %s13, 0
      %p117 = por %p115, %p116
      %p118 = scmp.ne.s32.totalorder %s110, %s112
      %p119 = scmp.eq.s32.totalorder %s18, 1
      %p120 = por %p118, %p119
      %p121 = scmp.ne.s32.totalorder %s112, %s113
      %p122 = scmp.eq.s32.totalorder %s18, 0
      %p123 = por %p121, %p122
      %p124 = scmp.ne.s32.totalorder %s112, %s113
      %p125 = scmp.eq.s32.totalorder %s19, 1
      %p126 = por %p124, %p125
      %p128 = scmp.ne.s32.totalorder %s113, %s127
      %p129 = scmp.eq.s32.totalorder %s19, 0
      %p130 = por %p128, %p129
      %s131 = ssub.s32 %s20, %s32
      %s132 = ssub.s32 %s21, %s28
      %s133 = sor.u32 %s131, %s132
      %p134 = scmp.eq.s32.totalorder %s133, 0
      %s136 = sadd.s32 %s135, 1
      %s137 = scalar_select %p134, %s135, %s136
      %p140 = pneg %p134
      %p141 = scmp.eq.s32.totalorder %s13, 1
      %p142 = por %p140, %p141
      %p143 = scmp.ne.s32.totalorder %s135, %s138
      %p144 = scmp.eq.s32.totalorder %s13, 0
      %p145 = por %p143, %p144
      %p146 = scmp.ne.s32.totalorder %s135, %s138
      %p147 = scmp.eq.s32.totalorder %s18, 1
      %p148 = por %p146, %p147
      %p149 = scmp.ne.s32.totalorder %s138, %s139
      %p150 = scmp.eq.s32.totalorder %s18, 0
      %p151 = por %p149, %p150
      %p152 = scmp.ne.s32.totalorder %s138, %s139
      %p153 = scmp.eq.s32.totalorder %s19, 1
      %p154 = por %p152, %p153
      %p156 = scmp.ne.s32.totalorder %s139, %s155
      %p157 = scmp.eq.s32.totalorder %s19, 0
      %p158 = por %p156, %p157
      %p159 = scmp.le.s32.totalorder 1, %s13
      %p160 = scmp.lt.s32.totalorder %s13, 3
      %p161 = pnand %p159, %p160
      %p162 = pneg %p161
      // Predicated region
      $region9: #{tpu_custom_call.1} parent=5 // pred_check
        _
      $region10: #{tpu_custom_call.1} parent=5 // pred_check_branch
        %164 = sbr.rel (%p161) target = $region12
      $region11: #{tpu_custom_call.1} parent=5 // pred_region
        %s165 = ssub.s32 %s13, 1
        // Predicated region
        $region13: #{tpu_custom_call.1} parent=11 // pred_check
          %p166 = pneg %p102
        $region14: #{tpu_custom_call.1} parent=11 // pred_check_branch
          %168 = sbr.rel (%p166) target = $region16
        $region15: #{tpu_custom_call.1} parent=11 // pred_region
          _
        $region16: #{tpu_custom_call.1} parent=11 // pred_fallthru
          _
        // Predicated region
        $region17: #{tpu_custom_call.1} parent=11 // pred_check
          %p169 = pneg %p123
        $region18: #{tpu_custom_call.1} parent=11 // pred_check_branch
          %171 = sbr.rel (%p169) target = $region20
        $region19: #{tpu_custom_call.1} parent=11 // pred_region
          _
        $region20: #{tpu_custom_call.1} parent=11 // pred_fallthru
          _
      $region12: #{tpu_custom_call.1} parent=5 // pred_fallthru
        _
      %p172 = scmp.lt.s32.totalorder %s13, 2
      // Predicated region
      $region21: #{tpu_custom_call.1} parent=5 // pred_check
        %p173 = pneg %p172
      $region22: #{tpu_custom_call.1} parent=5 // pred_check_branch
        %175 = sbr.rel (%p173) target = $region24
      $region23: #{tpu_custom_call.1} parent=5 // pred_region
        // Predicated region
        $region25: #{tpu_custom_call.1} parent=23 // pred_check
          %p176 = pneg %p47
        $region26: #{tpu_custom_call.1} parent=23 // pred_check_branch
          %178 = sbr.rel (%p176) target = $region28
        $region27: #{tpu_custom_call.1} parent=23 // pred_region
          %p179 = scmp.lt.s32.totalorder %s20, 1
          %s180 = scalar_select %p179, %s20, 1
          %p181 = scmp.lt.s32.totalorder %s21, 0
          %s182 = scalar_select %p181, %s21, 0
          %s183 = sadd.s32 %s182, %s180
          %s184 = smul.addr %s183, 4
          %s185 = scalar_lea.vmem %s0, %s184
        $region28: #{tpu_custom_call.1} parent=23 // pred_fallthru
          _
        // Predicated region
        $region29: #{tpu_custom_call.1} parent=23 // pred_check
          %p186 = pneg %p75
        $region30: #{tpu_custom_call.1} parent=23 // pred_check_branch
          %188 = sbr.rel (%p186) target = $region32
        $region31: #{tpu_custom_call.1} parent=23 // pred_region
          %p189 = scmp.lt.s32.totalorder %s20, 1
          %s190 = scalar_select %p189, %s20, 1
          %p191 = scmp.lt.s32.totalorder %s21, 0
          %s192 = scalar_select %p191, %s21, 0
          %s193 = sadd.s32 %s192, %s190
          %s194 = smul.addr %s193, 4
          %s195 = scalar_lea.vmem %s1, %s194
        $region32: #{tpu_custom_call.1} parent=23 // pred_fallthru
          _
      $region24: #{tpu_custom_call.1} parent=5 // pred_fallthru
        _
      %p196 = scmp.le.s32.totalorder 1, %s13
      %p197 = scmp.lt.s32.totalorder %s13, 3
      %p198 = pnand %p196, %p197
      %p199 = pneg %p198
      // Predicated region
      $region33: #{tpu_custom_call.1} parent=5 // pred_check
        _
      $region34: #{tpu_custom_call.1} parent=5 // pred_check_branch
        %201 = sbr.rel (%p198) target = $region36
      $region35: #{tpu_custom_call.1} parent=5 // pred_region
        %s202 = ssub.s32 %s13, 1
        %p203 = scmp.lt.s32.totalorder %s22, 1
        %s204 = scalar_select %p203, %s22, 1
        %p205 = scmp.lt.s32.totalorder %s23, 0
        %s206 = scalar_select %p205, %s23, 0
        %s207 = sadd.s32 %s206, %s204
        %s208 = smul.addr %s207, 4
        %s209 = scalar_lea.vmem %s0, %s208
        %p210 = pneg %p53
        %p211 = pneg %p50
        %p212 = scmp.lt.s32.totalorder %s22, 1
        %s213 = scalar_select %p212, %s22, 1
        %p214 = scmp.lt.s32.totalorder %s23, 0
        %s215 = scalar_select %p214, %s23, 0
        %s216 = sadd.s32 %s215, %s213
        %s217 = smul.addr %s216, 4
        %s218 = scalar_lea.vmem %s1, %s217
        %p219 = pneg %p81
        %p220 = pneg %p78
        %p221 = pneg %p102
        %p222 = pneg %p99
        %p223 = pneg %p123
        %p224 = pneg %p120
        %p225 = pneg %p151
        %p226 = pneg %p148
        %s227 = sand.u32 %s138, 1
        %s228 = scalar_lea.sflag [#allocation3], %s227
        %s229 = sand.u32 %s138, 1
        %s230 = smul.addr %s229, 4
        %s231 = scalar_lea.vmem [#allocation2], %s230
        %p232 = scmp.lt.s32.totalorder %s22, 1
        %s233 = scalar_select %p232, %s22, 1
        %p234 = scmp.lt.s32.totalorder %s23, 0
        %s235 = scalar_select %p234, %s23, 0
        %s236 = sadd.s32 %s235, %s233
        %s237 = smul.addr %s236, 4
        %s238 = scalar_lea.vmem %s0, %s237
        %p239 = scmp.lt.s32.totalorder %s22, 1
        %s240 = scalar_select %p239, %s22, 1
        %p241 = scmp.lt.s32.totalorder %s23, 0
        %s242 = scalar_select %p241, %s23, 0
        %s243 = sadd.s32 %s242, %s240
        %s244 = smul.addr %s243, 4
        %s245 = scalar_lea.vmem %s1, %s244
        %v246 = vld [vmem:[%s238] sm:$0xf]
        %v247 = vld [vmem:[%s245] sm:$0xf]
        %249 = vrot.lane.b32.xlu0 %v246, 1
        %v250 = vpop.permute.xlu0 %249
        %vm252 = vcmask 7168
        %v253 = vsel %vm252, %v247, %v250
        %254 = vrot.lane.b32.xlu0 %v246, 127
        %v255 = vpop.permute.xlu0 %254
        %258 = vrot.lane.b32.xlu0 %v247, 14
        %v259 = vpop.permute.xlu0 %258
        %vm261 = vcmask 121856
        %v262 = vsel %vm261, %v255, %v259
        %v263 = vrot.slane %v246, 4
        %vm265 = vcmask 1043456
        %v266 = vsel %vm265, %v253, %v263
        %v267 = vld [vmem:[%s2] sm:$0xf]
        %v268 = vld [vmem:[%s3] sm:$0xf]
        %270 = vset.pattern.permute.xlu0 0
        %271 = vperm.xlu0 %270, %v268
        %v272 = vpop.permute.xlu0 %271
        %vm274 = vcmask 97280
        %v276 = vsel %vm274, %v267, 0
        %v279 = vsel %vm265, %v262, 0
        %281 = vmatprep.subr.mxu0 0.0
        %282 = vmatpush1.msra.mxu0 0.0
        %283 = vmatprep.subr.mxu0 0.0
        %284 = vmatpush1.msra.mxu0 0.0
        %285 = vmatprep.subr.mxu0 0.0
        %286 = vmatpush1.msra.mxu0 0.0
        %287 = vmatprep.subr.mxu0 0.0
        %288 = vmatpush1.msra.mxu0 0.0
        %289 = vmatprep.subr.mxu0 0.0
        %290 = vmatpush1.msra.mxu0 0.0
        %291 = vmatprep.subr.mxu0 0.0
        %292 = vmatpush1.msra.mxu0 0.0
        %293 = vmatprep.subr.mxu0 0.0
        %294 = vmatpush1.msra.mxu0 0.0
        %295 = vmatprep.subr.mxu0 0.0
        %296 = vmatpush1.msra.mxu0 0.0
        %297 = vmatprep.subr.mxu0 0.0
        %298 = vmatpush1.msra.mxu0 0.0
        %299 = vmatprep.subr.mxu0 0.0
        %300 = vmatpush1.msra.mxu0 0.0
        %301 = vmatprep.subr.mxu0 0.0
        %302 = vmatpush1.msra.mxu0 0.0
        %303 = vmatprep.subr.mxu0 0.0
        %304 = vmatpush1.msra.mxu0 0.0
        %305 = vmatprep.subr.mxu0 0.0
        %306 = vmatpush1.msra.mxu0 0.0
        %307 = vmatprep.subr.mxu0 0.0
        %308 = vmatpush1.msra.mxu0 0.0
        %309 = vmatprep.subr.mxu0 0.0
        %310 = vmatpush1.msra.mxu0 %v279
        %311 = vmatprep.subr.mxu0 0.0
        %312 = vmatpush1.msra.mxu0 %v266
        %313 = vmatprep.subr.mxu0 0.0
        %314 = vmatpush2.msra.mxu0 0.0
        %315 = vmatprep.subr.mxu0 0.0
        %316 = vmatpush2.msra.mxu0 0.0
        %317 = vmatprep.subr.mxu0 0.0
        %318 = vmatpush2.msra.mxu0 0.0
        %319 = vmatprep.subr.mxu0 0.0
        %320 = vmatpush2.msra.mxu0 0.0
        %321 = vmatprep.subr.mxu0 0.0
        %322 = vmatpush2.msra.mxu0 0.0
        %323 = vmatprep.subr.mxu0 0.0
        %324 = vmatpush2.msra.mxu0 0.0
        %325 = vmatprep.subr.mxu0 0.0
        %326 = vmatpush2.msra.mxu0 0.0
        %327 = vmatprep.subr.mxu0 0.0
        %328 = vmatpush2.msra.mxu0 0.0
        %329 = vmatprep.subr.mxu0 0.0
        %330 = vmatpush2.msra.mxu0 0.0
        %331 = vmatprep.subr.mxu0 0.0
        %332 = vmatpush2.msra.mxu0 0.0
        %333 = vmatprep.subr.mxu0 0.0
        %334 = vmatpush2.msra.mxu0 0.0
        %335 = vmatprep.subr.mxu0 0.0
        %336 = vmatpush2.msra.mxu0 0.0
        %337 = vmatprep.subr.mxu0 0.0
        %338 = vmatpush2.msra.mxu0 0.0
        %339 = vmatprep.subr.mxu0 0.0
        %340 = vmatpush2.msra.mxu0 0.0
        %341 = vmatprep.subr.mxu0 0.0
        %342 = vmatpush2.msra.mxu0 0.0
        %343 = vmatprep.subr.mxu0 0.0
        %344 = vmatpush2.msra.mxu0 0.0
        %345 = vmatprep.mubr.f32.mxu0 0.0
        %346 = vmatmul.mubr.f32.gmra.mxu0 %v276
        %v347 = vpop.f32.mrf.mxu0
        %v348 = vadd.f32 %v272, %v347
        %v349 = vpop.f32.mrf.mxu0
        %350 = vdwg.mxu0
        %vm351 = vcmask 125952
        %352 = vst.msk [vmem:[%s231] sm:$0xf] %vm351, %v348
        %s353 = sand.u32 %s138, 1
        %s354 = scalar_lea.sflag [#allocation3], %s353
        %s355 = sand.u32 %s138, 1
        %s356 = smul.addr %s355, 4
        %s357 = scalar_lea.vmem [#allocation2], %s356
        // Predicated region
        $region37: #{tpu_custom_call.1} parent=35 // pred_check
          %p358 = pneg %p148
        $region38: #{tpu_custom_call.1} parent=35 // pred_check_branch
          %360 = sbr.rel (%p358) target = $region40
        $region39: #{tpu_custom_call.1} parent=35 // pred_region
          %s362 = ssub.s32 64, 64
          %363 = vsyncadd %s354, %s362
          %s364 = sadd.s32 %s23, %s22
          %s365 = smul.addr %s364, 64
          %s366 = scalar_lea.hbm %s4, %s365
          %s368 = sshll.u32 %s357, 4
          %s369 = int_to_ptr.vmem [resolvable:$true] %s368
          %371 = dma.vmem_to_hbm [thread:$0]  %s369, 64, %s366, %s354
        $region40: #{tpu_custom_call.1} parent=35 // pred_fallthru
          _
      $region36: #{tpu_custom_call.1} parent=5 // pred_fallthru
        _
      %p372 = scmp.le.s32.totalorder 2, %s13
      // Predicated region
      $region41: #{tpu_custom_call.1} parent=5 // pred_check
        %p373 = pneg %p372
      $region42: #{tpu_custom_call.1} parent=5 // pred_check_branch
        %375 = sbr.rel (%p373) target = $region44
      $region43: #{tpu_custom_call.1} parent=5 // pred_region
        %s376 = ssub.s32 %s13, 2
        // Predicated region
        $region45: #{tpu_custom_call.1} parent=43 // pred_check
          %p377 = pneg %p154
        $region46: #{tpu_custom_call.1} parent=43 // pred_check_branch
          %379 = sbr.rel (%p377) target = $region48
        $region47: #{tpu_custom_call.1} parent=43 // pred_region
          %s380 = sand.u32 %s139, 1
          %s381 = scalar_lea.sflag [#allocation3], %s380
          %s382 = sand.u32 %s139, 1
          %s383 = smul.addr %s382, 4
          %s384 = scalar_lea.vmem [#allocation2], %s383
          %385 = dma.done %s381, 64
        $region48: #{tpu_custom_call.1} parent=43 // pred_fallthru
          _
      $region44: #{tpu_custom_call.1} parent=5 // pred_fallthru
        _
    $region6: #{tpu_custom_call.1} parent=1 // loop_footer
      %s17 = sadd.s32 1, %s13
    $region7: #{tpu_custom_call.1} parent=1 // loop_footer_branch
      %12 = sbr.rel target = $region3
    $region8: #{tpu_custom_call.1} parent=1 // loop_exit
      _
    %386 = vsyncpa [#allocation3], 1
    %s387 = scalar_lea.sflag [#allocation3], 1
    %388 = vsyncpa %s387, 1

</llo_original>
